<compile_context>
chip_gen: v6e
topology: v6e:2x2x1
jax: 0.10.0
libtpu: 0.0.40
codegen_flags: <defaults>
</compile_context>

<pallas_src>
import jax
import jax.numpy as jnp
from jax.experimental import pallas as pl
from jax.experimental.pallas import tpu as pltpu


def ensemble_mlp_kernel(x_ref, w1_ref, b1_ref, w2_ref, b2_ref, o_ref):
    # One grid step == one GROUP of E_BLOCK ensemble members, fused into
    # lane-dense matmuls:
    #   layer 1: x[B,D_in] @ W1_cat[D_in, E_BLOCK*H]                (one MXU push)
    #   layer 2: h[B,E_BLOCK*H] @ W2_bd[E_BLOCK*H, E_BLOCK*D_out]   (block-diagonal)
    # Output is one lane-dense [B, E_BLOCK*D_out] store.
    x = x_ref[...]                                                  # (B, D_in)
    h = jnp.dot(x, w1_ref[...], preferred_element_type=jnp.float32) + b1_ref[...]
    h = jnp.maximum(h, 0.0)                                         # ReLU on the VPU
    y = jnp.dot(h, w2_ref[...], preferred_element_type=jnp.float32) + b2_ref[...]
    o_ref[...] = y.astype(o_ref.dtype)


def _pick_e_block(E, H, target_lanes=128):
    """Largest divisor of E such that E_BLOCK*H reaches ~target lane width.

    For H >= 128 this returns 1 (each member is already lane-dense and the
    block-diagonal layer-2 weight degenerates to the original W2, no blowup)."""
    want = max(1, target_lanes // max(H, 1))
    eb = 1
    for d in range(1, min(E, want) + 1):
        if E % d == 0:
            eb = d
    return eb


def ensemble_forward(x, w1, b1, w2, b2, *, cast_weights_to_bf16=False):
    """x: [B, D_in]; stacked params w1:[E,D_in,H], b1:[E,1,H],
    w2:[E,H,D_out], b2:[E,1,D_out]. Returns [E, B, D_out] (stacked, like vmap)."""
    E, D_in, H = w1.shape
    D_out = w2.shape[-1]
    B = x.shape[0]

    e_block = _pick_e_block(E, H)
    G = E // e_block                      # number of ensemble groups (grid steps)
    EH = e_block * H                      # fused hidden width  (lane axis, >=128 when possible)
    EO = e_block * D_out                  # fused output width  (lane axis, >=128 when possible)

    # ---- wrapper-side layout plumbing (free reshapes/transposes) ----------
    # Concatenate each group's W1/b1 along the output (lane) axis.
    w1_cat = w1.reshape(G, e_block, D_in, H).transpose(0, 2, 1, 3).reshape(G, D_in, EH)
    b1_cat = b1.reshape(G, e_block, 1, H).transpose(0, 2, 1, 3).reshape(G, 1, EH)
    b2_cat = b2.reshape(G, e_block, 1, D_out).transpose(0, 2, 1, 3).reshape(G, 1, EO)
    # Block-diagonal layer-2 weight: block (e, e) = W2[e], off-diagonals zero.
    w2_g = w2.reshape(G, e_block, H, D_out)
    eye = jnp.eye(e_block, dtype=w2.dtype)
    w2_bd = (w2_g[:, :, :, None, :] * eye[None, :, None, :, None]).reshape(G, EH, EO)

    if cast_weights_to_bf16:
        # Memory-bound regime (large weights streamed once): halve HBM traffic.
        # Accumulation stays f32 via preferred_element_type in the kernel.
        w1_cat = w1_cat.astype(jnp.bfloat16)
        w2_bd = w2_bd.astype(jnp.bfloat16)

    itemsize = x.dtype.itemsize
    cost = pl.CostEstimate(
        flops=2 * B * (E * D_in * H + G * EH * EO),
        transcendentals=0,
        bytes_accessed=(
            x.size * itemsize
            + w1_cat.size * w1_cat.dtype.itemsize
            + b1_cat.size * b1_cat.dtype.itemsize
            + w2_bd.size * w2_bd.dtype.itemsize
            + b2_cat.size * b2_cat.dtype.itemsize
            + G * B * EO * itemsize
        ),
    )

    grid_spec = pltpu.PrefetchScalarGridSpec(
        num_scalar_prefetch=0,
        grid=(G,),
        in_specs=[
            # Shared input; index-invariant across the grid (not re-DMA'd).
            pl.BlockSpec((B, D_in), lambda g: (0, 0)),
            # Per-group params; leading group dim squeezed -> 2D refs in kernel.
            pl.BlockSpec((None, D_in, EH), lambda g: (g, 0, 0)),
            pl.BlockSpec((None, 1, EH), lambda g: (g, 0, 0)),
            pl.BlockSpec((None, EH, EO), lambda g: (g, 0, 0)),
            pl.BlockSpec((None, 1, EO), lambda g: (g, 0, 0)),
        ],
        out_specs=pl.BlockSpec((None, B, EO), lambda g: (g, 0, 0)),
    )

    out = pl.pallas_call(
        ensemble_mlp_kernel,
        out_shape=jax.ShapeDtypeStruct((G, B, EO), x.dtype),
        grid_spec=grid_spec,
        compiler_params=pltpu.CompilerParams(
            # Groups are fully independent (disjoint output blocks): legal to
            # shard across v7x's two TensorCores; neutral on v5e/v6e.
            dimension_semantics=("parallel",),
        ),
        cost_estimate=cost,
    )(x, w1_cat, b1_cat, w2_bd, b2_cat)

    # [G, B, e_block*D_out] -> [E, B, D_out] (vmap's stacked-output convention).
    return out.reshape(G, B, e_block, D_out).transpose(0, 2, 1, 3).reshape(E, B, D_out)


def ensemble_reference(x, w1, b1, w2, b2):
    """Pure-JAX reference mirroring torch.vmap(fn, in_dims=(0, 0, None))."""
    def member(w1_e, b1_e, w2_e, b2_e):
        h = jnp.maximum(x @ w1_e + b1_e, 0.0)
        return h @ w2_e + b2_e
    return jax.vmap(member)(w1, b1, w2, b2)


if __name__ == "__main__":
    # Small shapes: ensemble of E=4 MLPs, batch=8, hidden=32.
    E, B, D_in, H, D_out = 4, 8, 32, 32, 32

    key = jax.random.PRNGKey(0)
    kx, k1, k2, k3, k4 = jax.random.split(key, 5)

    x = jax.random.normal(kx, (B, D_in), dtype=jnp.float32)
    # Deterministic stacked parameters (synthetic; analogous to
    # combine_state_for_ensemble stacking each member's params on axis 0).
    w1 = jax.random.normal(k1, (E, D_in, H), dtype=jnp.float32) * 0.1
    b1 = jax.random.normal(k2, (E, 1, H), dtype=jnp.float32) * 0.1
    w2 = jax.random.normal(k3, (E, H, D_out), dtype=jnp.float32) * 0.1
    b2 = jax.random.normal(k4, (E, 1, D_out), dtype=jnp.float32) * 0.1

    out = jax.block_until_ready(ensemble_forward(x, w1, b1, w2, b2))

    ref = ensemble_reference(x, w1, b1, w2, b2)
    assert out.shape == (E, B, D_out), out.shape
    assert jnp.allclose(out, ref, atol=1e-5, rtol=1e-5), "mismatch vs reference"

    print("KERNEL_OK")
</pallas_src>

<mosaic_0001>
module attributes {stable_mosaic.version = 11 : i64} {
  func.func @ensemble_mlp_kernel(%arg0: i32, %arg1: memref<8x32xf32, #tpu.memory_space<vmem>>, %arg2: memref<1x32x128xf32, #tpu.memory_space<vmem>>, %arg3: memref<1x1x128xf32, #tpu.memory_space<vmem>>, %arg4: memref<1x128x128xf32, #tpu.memory_space<vmem>>, %arg5: memref<1x1x128xf32, #tpu.memory_space<vmem>>, %arg6: memref<1x8x128xf32, #tpu.memory_space<vmem>>) attributes {dimension_semantics = [#tpu.dimension_semantics<parallel>], iteration_bounds = array<i64: 1>, scalar_prefetch = 0 : i64, scratch_operands = 0 : i64, tpu.core_type = #tpu.core_type<tc>, window_params = [{pipeline_mode = #tpu.pipeline_mode<synchronous>, transform_indices = @transform_0, window_bounds = array<i64: 8, 32>}, {transform_indices = @transform_1, window_bounds = array<i64: 1, 32, 128>}, {transform_indices = @transform_2, window_bounds = array<i64: 1, 1, 128>}, {transform_indices = @transform_3, window_bounds = array<i64: 1, 128, 128>}, {transform_indices = @transform_4, window_bounds = array<i64: 1, 1, 128>}, {transform_indices = @transform_5, window_bounds = array<i64: 1, 8, 128>}]} {
    %c0 = arith.constant 0 : index
    %c0_0 = arith.constant 0 : index
    %0 = vector.load %arg1[%c0, %c0_0] : memref<8x32xf32, #tpu.memory_space<vmem>>, vector<8x32xf32>
    %c0_1 = arith.constant 0 : index
    %c0_2 = arith.constant 0 : index
    %c0_3 = arith.constant 0 : index
    %1 = vector.load %arg2[%c0_1, %c0_2, %c0_3] : memref<1x32x128xf32, #tpu.memory_space<vmem>>, vector<1x32x128xf32>
    %2 = vector.shape_cast %1 : vector<1x32x128xf32> to vector<32x128xf32>
    %cst = arith.constant dense<0.000000e+00> : vector<8x128xf32>
    %3 = tpu.matmul %0, %2, %cst {dimension_numbers = #tpu.dot_dimension_numbers<[1], [0], [0], [1], [0, 0, 1, 1], [], []>} : vector<8x32xf32>, vector<32x128xf32>, vector<8x128xf32> -> vector<8x128xf32>
    %c0_4 = arith.constant 0 : index
    %c0_5 = arith.constant 0 : index
    %c0_6 = arith.constant 0 : index
    %4 = vector.load %arg3[%c0_4, %c0_5, %c0_6] : memref<1x1x128xf32, #tpu.memory_space<vmem>>, vector<1x1x128xf32>
    %5 = vector.shape_cast %4 : vector<1x1x128xf32> to vector<1x128xf32>
    %6 = vector.broadcast %5 : vector<1x128xf32> to vector<8x128xf32>
    %7 = arith.addf %3, %6 : vector<8x128xf32>
    %cst_7 = arith.constant 0.000000e+00 : f32
    %8 = vector.broadcast %cst_7 : f32 to vector<8x128xf32>
    %9 = arith.maximumf %7, %8 : vector<8x128xf32>
    %c0_8 = arith.constant 0 : index
    %c0_9 = arith.constant 0 : index
    %c0_10 = arith.constant 0 : index
    %10 = vector.load %arg4[%c0_8, %c0_9, %c0_10] : memref<1x128x128xf32, #tpu.memory_space<vmem>>, vector<1x128x128xf32>
    %11 = vector.shape_cast %10 : vector<1x128x128xf32> to vector<128x128xf32>
    %cst_11 = arith.constant dense<0.000000e+00> : vector<8x128xf32>
    %12 = tpu.matmul %9, %11, %cst_11 {dimension_numbers = #tpu.dot_dimension_numbers<[1], [0], [0], [1], [0, 0, 1, 1], [], []>} : vector<8x128xf32>, vector<128x128xf32>, vector<8x128xf32> -> vector<8x128xf32>
    %c0_12 = arith.constant 0 : index
    %c0_13 = arith.constant 0 : index
    %c0_14 = arith.constant 0 : index
    %13 = vector.load %arg5[%c0_12, %c0_13, %c0_14] : memref<1x1x128xf32, #tpu.memory_space<vmem>>, vector<1x1x128xf32>
    %14 = vector.shape_cast %13 : vector<1x1x128xf32> to vector<1x128xf32>
    %15 = vector.broadcast %14 : vector<1x128xf32> to vector<8x128xf32>
    %16 = arith.addf %12, %15 : vector<8x128xf32>
    %c0_15 = arith.constant 0 : index
    %c0_16 = arith.constant 0 : index
    %c0_17 = arith.constant 0 : index
    %17 = vector.load %arg6[%c0_15, %c0_16, %c0_17] : memref<1x8x128xf32, #tpu.memory_space<vmem>>, vector<1x8x128xf32>
    %18 = vector.shape_cast %17 : vector<1x8x128xf32> to vector<8x128xf32>
    %19 = vector.shape_cast %16 : vector<8x128xf32> to vector<1x8x128xf32>
    tpu.vector_store %arg6[%c0_15, %c0_16, %c0_17], %19 {strides = array<i32>} : memref<1x8x128xf32, #tpu.memory_space<vmem>>, vector<1x8x128xf32>,
    return
  }
  func.func @transform_0(%arg0: i32) -> (i32, i32) {
    %c0_i32 = arith.constant 0 : i32
    %c0_i32_0 = arith.constant 0 : i32
    %c0_i32_1 = arith.constant 0 : i32
    return %c0_i32, %c0_i32_0 : i32, i32
  }
  func.func @transform_1(%arg0: i32) -> (i32, i32, i32) {
    %c0_i32 = arith.constant 0 : i32
    %c0_i32_0 = arith.constant 0 : i32
    %c0_i32_1 = arith.constant 0 : i32
    return %arg0, %c0_i32, %c0_i32_0 : i32, i32, i32
  }
  func.func @transform_2(%arg0: i32) -> (i32, i32, i32) {
    %c0_i32 = arith.constant 0 : i32
    %c0_i32_0 = arith.constant 0 : i32
    %c0_i32_1 = arith.constant 0 : i32
    return %arg0, %c0_i32, %c0_i32_0 : i32, i32, i32
  }
  func.func @transform_3(%arg0: i32) -> (i32, i32, i32) {
    %c0_i32 = arith.constant 0 : i32
    %c0_i32_0 = arith.constant 0 : i32
    %c0_i32_1 = arith.constant 0 : i32
    return %arg0, %c0_i32, %c0_i32_0 : i32, i32, i32
  }
  func.func @transform_4(%arg0: i32) -> (i32, i32, i32) {
    %c0_i32 = arith.constant 0 : i32
    %c0_i32_0 = arith.constant 0 : i32
    %c0_i32_1 = arith.constant 0 : i32
    return %arg0, %c0_i32, %c0_i32_0 : i32, i32, i32
  }
  func.func @transform_5(%arg0: i32) -> (i32, i32, i32) {
    %c0_i32 = arith.constant 0 : i32
    %c0_i32_0 = arith.constant 0 : i32
    %c0_i32_1 = arith.constant 0 : i32
    return %arg0, %c0_i32, %c0_i32_0 : i32, i32, i32
  }
}

</mosaic_0001>

<llo_original>
// kernel: tpu_custom_call.1
$region0: #{tpu_custom_call.1}
  #allocation0 [shape = 'u32[]', space=smem, size = 0x4, offset = 0x4, fixed_abs, tag = 'smem constant byte address 0x4 - core index']
  #allocation1 [shape = 'u32[144,128]{1,0:T(1,128)}', space=vmem, size = 0x12000, scoped, tag = 'internal scratch']
  %s0 = inlined_call_operand.hbm [shape: f32[8,32], index: 0, kind: input, shape index: {}]
  %s1 = inlined_call_operand.hbm [shape: f32[1,32,128], index: 1, kind: input, shape index: {}]
  %s2 = inlined_call_operand.vmem [shape: f32[1,1,128], index: 2, kind: input, shape index: {}]
  %s3 = inlined_call_operand.hbm [shape: f32[1,128,128], index: 3, kind: input, shape index: {}]
  %s4 = inlined_call_operand.vmem [shape: f32[1,1,128], index: 4, kind: input, shape index: {}]
  %s5 = inlined_call_operand.hbm [shape: f32[1,8,128], index: 5, kind: output, shape index: {}]
  %s6 = sld [smem:[#allocation0]]
  $region42: #{tpu_custom_call.1} parent=0
    _
  %s8 = ssub.s32 1, %s6
  %s9 = scalar_select 0, %s8, %s6
  $region1: #{tpu_custom_call.1} parent=0
    #allocation2 [shape = 'u8[4096]{0}', space=vmem, size = 0x1000, scoped, tag = 'input window, operand 0, single buffered']
    #allocation3 [shape = 's32[1]{0}', space=sflag, size = 0x4, scoped, tag = 'scoped memory for tpu_custom_call.1']
    #allocation4 [shape = 's32[1]{0}', space=sflag, size = 0x4, scoped, tag = 'scoped memory for tpu_custom_call.1']
    #allocation5 [shape = 'u8[16384]{0}', space=vmem, size = 0x4000, scoped, tag = 'input window, operand 1, single buffered']
    #allocation6 [shape = 's32[1]{0}', space=sflag, size = 0x4, scoped, tag = 'scoped memory for tpu_custom_call.1']
    #allocation7 [shape = 'u8[65536]{0}', space=vmem, size = 0x10000, scoped, tag = 'input window, operand 3, single buffered']
    #allocation8 [shape = 'u8[4096]{0}', space=vmem, size = 0x1000, scoped, tag = 'output window, operand 0, single buffered']
    %10 = vsyncpa [#allocation3], 0
    %11 = vsyncpa [#allocation6], 0
    %12 = vsyncpa [#allocation4], 0
    // Predicated region
    $region2: #{tpu_custom_call.1} parent=1 // pred_check
      _
    $region3: #{tpu_custom_call.1} parent=1 // pred_check_branch
      %14 = sbr.rel (0) target = $region5
    $region4: #{tpu_custom_call.1} parent=1 // pred_region
      %s16 = ssub.s32 128, 128
      %17 = vsyncadd [#allocation3], %s16
      %s19 = sshll.u32 [#allocation2], 4
      %s20 = int_to_ptr.vmem [resolvable:$true] %s19
      %22 = dma.hbm_to_vmem [thread:$0]  %s0, 128, %s20, [#allocation3]
    $region5: #{tpu_custom_call.1} parent=1 // pred_fallthru
      _
    // Predicated region
    $region6: #{tpu_custom_call.1} parent=1 // pred_check
      _
    $region7: #{tpu_custom_call.1} parent=1 // pred_check_branch
      %24 = sbr.rel (0) target = $region9
    $region8: #{tpu_custom_call.1} parent=1 // pred_region
      %s26 = ssub.s32 512, 512
      %27 = vsyncadd [#allocation6], %s26
      %s28 = sshll.u32 [#allocation5], 4
      %s29 = int_to_ptr.vmem [resolvable:$true] %s28
      %34 = dma.hbm_to_vmem [thread:$0]  %s1, 512, %s29, [#allocation6], 128, 128, 8
    $region9: #{tpu_custom_call.1} parent=1 // pred_fallthru
      _
    // Predicated region
    $region10: #{tpu_custom_call.1} parent=1 // pred_check
      _
    $region11: #{tpu_custom_call.1} parent=1 // pred_check_branch
      %36 = sbr.rel (0) target = $region13
    $region12: #{tpu_custom_call.1} parent=1 // pred_region
      _
    $region13: #{tpu_custom_call.1} parent=1 // pred_fallthru
      _
    // Predicated region
    $region14: #{tpu_custom_call.1} parent=1 // pred_check
      _
    $region15: #{tpu_custom_call.1} parent=1 // pred_check_branch
      %38 = sbr.rel (0) target = $region17
    $region16: #{tpu_custom_call.1} parent=1 // pred_region
      %s40 = ssub.s32 2048, 2048
      %41 = vsyncadd [#allocation6], %s40
      %s42 = sshll.u32 [#allocation7], 4
      %s43 = int_to_ptr.vmem [resolvable:$true] %s42
      %48 = dma.hbm_to_vmem [thread:$0]  %s3, 2048, %s43, [#allocation6], 128, 128, 8
    $region17: #{tpu_custom_call.1} parent=1 // pred_fallthru
      _
    // Predicated region
    $region18: #{tpu_custom_call.1} parent=1 // pred_check
      _
    $region19: #{tpu_custom_call.1} parent=1 // pred_check_branch
      %50 = sbr.rel (0) target = $region21
    $region20: #{tpu_custom_call.1} parent=1 // pred_region
      _
    $region21: #{tpu_custom_call.1} parent=1 // pred_fallthru
      _
    // Predicated region
    $region22: #{tpu_custom_call.1} parent=1 // pred_check
      _
    $region23: #{tpu_custom_call.1} parent=1 // pred_check_branch
      %52 = sbr.rel (0) target = $region25
    $region24: #{tpu_custom_call.1} parent=1 // pred_region
      %53 = dma.done [#allocation3], 128
    $region25: #{tpu_custom_call.1} parent=1 // pred_fallthru
      _
    // Predicated region
    $region26: #{tpu_custom_call.1} parent=1 // pred_check
      _
    $region27: #{tpu_custom_call.1} parent=1 // pred_check_branch
      %55 = sbr.rel (0) target = $region29
    $region28: #{tpu_custom_call.1} parent=1 // pred_region
      %56 = dma.done [#allocation6], 512
    $region29: #{tpu_custom_call.1} parent=1 // pred_fallthru
      _
    // Predicated region
    $region30: #{tpu_custom_call.1} parent=1 // pred_check
      _
    $region31: #{tpu_custom_call.1} parent=1 // pred_check_branch
      %58 = sbr.rel (0) target = $region33
    $region32: #{tpu_custom_call.1} parent=1 // pred_region
      %59 = dma.done [#allocation6], 2048
    $region33: #{tpu_custom_call.1} parent=1 // pred_fallthru
      _
    %v60 = vld [vmem:[#allocation2] sm:$0xff]
    %v61 = vld [vmem:[#allocation5] sm:$0xff]
    %v62 = vld [vmem:[#allocation5 + $0x8] sm:$0xff]
    %v63 = vld [vmem:[#allocation5 + $0x10] sm:$0xff]
    %v64 = vld [vmem:[#allocation5 + $0x18] sm:$0xff]
    %v65 = vld [vmem:[%s2] sm:$0x1]
    %v67 = vlaneseq
    %v68 = vshrl.u32 %v67, 7
    %v69 = vsub.s32 0, %v68
    %v70 = vrot.slane %v65, %v69
    %vm72 = vcmask 261120
    %v74 = vsel %vm72, %v60, 0
    %76 = vmatprep.subr.mxu0 0.0
    %77 = vmatpush1.msra.mxu0 0.0
    %78 = vmatprep.subr.mxu0 0.0
    %79 = vmatpush1.msra.mxu0 0.0
    %80 = vmatprep.subr.mxu0 0.0
    %81 = vmatpush1.msra.mxu0 0.0
    %82 = vmatprep.subr.mxu0 0.0
    %83 = vmatpush1.msra.mxu0 0.0
    %84 = vmatprep.subr.mxu0 0.0
    %85 = vmatpush1.msra.mxu0 0.0
    %86 = vmatprep.subr.mxu0 0.0
    %87 = vmatpush1.msra.mxu0 0.0
    %88 = vmatprep.subr.mxu0 0.0
    %89 = vmatpush1.msra.mxu0 0.0
    %90 = vmatprep.subr.mxu0 0.0
    %91 = vmatpush1.msra.mxu0 0.0
    %92 = vmatprep.subr.mxu0 0.0
    %93 = vmatpush1.msra.mxu0 0.0
    %94 = vmatprep.subr.mxu0 0.0
    %95 = vmatpush1.msra.mxu0 0.0
    %96 = vmatprep.subr.mxu0 0.0
    %97 = vmatpush1.msra.mxu0 0.0
    %98 = vmatprep.subr.mxu0 0.0
    %99 = vmatpush1.msra.mxu0 0.0
    %100 = vmatprep.subr.mxu0 0.0
    %101 = vmatpush1.msra.mxu0 %v64
    %102 = vmatprep.subr.mxu0 0.0
    %103 = vmatpush1.msra.mxu0 %v63
    %104 = vmatprep.subr.mxu0 0.0
    %105 = vmatpush1.msra.mxu0 %v62
    %106 = vmatprep.subr.mxu0 0.0
    %107 = vmatpush1.msra.mxu0 %v61
    %108 = vmatprep.subr.mxu0 0.0
    %109 = vmatpush2.msra.mxu0 0.0
    %110 = vmatprep.subr.mxu0 0.0
    %111 = vmatpush2.msra.mxu0 0.0
    %112 = vmatprep.subr.mxu0 0.0
    %113 = vmatpush2.msra.mxu0 0.0
    %114 = vmatprep.subr.mxu0 0.0
    %115 = vmatpush2.msra.mxu0 0.0
    %116 = vmatprep.subr.mxu0 0.0
    %117 = vmatpush2.msra.mxu0 0.0
    %118 = vmatprep.subr.mxu0 0.0
    %119 = vmatpush2.msra.mxu0 0.0
    %120 = vmatprep.subr.mxu0 0.0
    %121 = vmatpush2.msra.mxu0 0.0
    %122 = vmatprep.subr.mxu0 0.0
    %123 = vmatpush2.msra.mxu0 0.0
    %124 = vmatprep.subr.mxu0 0.0
    %125 = vmatpush2.msra.mxu0 0.0
    %126 = vmatprep.subr.mxu0 0.0
    %127 = vmatpush2.msra.mxu0 0.0
    %128 = vmatprep.subr.mxu0 0.0
    %129 = vmatpush2.msra.mxu0 0.0
    %130 = vmatprep.subr.mxu0 0.0
    %131 = vmatpush2.msra.mxu0 0.0
    %132 = vmatprep.subr.mxu0 0.0
    %133 = vmatpush2.msra.mxu0 0.0
    %134 = vmatprep.subr.mxu0 0.0
    %135 = vmatpush2.msra.mxu0 0.0
    %136 = vmatprep.subr.mxu0 0.0
    %137 = vmatpush2.msra.mxu0 0.0
    %138 = vmatprep.subr.mxu0 0.0
    %139 = vmatpush2.msra.mxu0 0.0
    %140 = vmatprep.mubr.f32.mxu0 0.0
    %141 = vmatmul.mubr.f32.gmra.mxu0 %v74
    %v142 = vpop.f32.mrf.mxu0
    %v143 = vadd.f32 %v70, %v142
    %v144 = vpop.f32.mrf.mxu0
    %145 = vdwg.mxu0
    %v146 = vmax.f32 %v143, 0.0
    %v147 = vld [vmem:[#allocation7] sm:$0xff]
    %v148 = vld [vmem:[#allocation7 + $0x8] sm:$0xff]
    %v149 = vld [vmem:[#allocation7 + $0x10] sm:$0xff]
    %v150 = vld [vmem:[#allocation7 + $0x18] sm:$0xff]
    %v151 = vld [vmem:[#allocation7 + $0x20] sm:$0xff]
    %v152 = vld [vmem:[#allocation7 + $0x28] sm:$0xff]
    %v153 = vld [vmem:[#allocation7 + $0x30] sm:$0xff]
    %v154 = vld [vmem:[#allocation7 + $0x38] sm:$0xff]
    %v155 = vld [vmem:[#allocation7 + $0x40] sm:$0xff]
    %v156 = vld [vmem:[#allocation7 + $0x48] sm:$0xff]
    %v157 = vld [vmem:[#allocation7 + $0x50] sm:$0xff]
    %v158 = vld [vmem:[#allocation7 + $0x58] sm:$0xff]
    %v159 = vld [vmem:[#allocation7 + $0x60] sm:$0xff]
    %v160 = vld [vmem:[#allocation7 + $0x68] sm:$0xff]
    %v161 = vld [vmem:[#allocation7 + $0x70] sm:$0xff]
    %v162 = vld [vmem:[#allocation7 + $0x78] sm:$0xff]
    %v163 = vld [vmem:[%s4] sm:$0x1]
    %v165 = vlaneseq
    %v166 = vshrl.u32 %v165, 7
    %v167 = vsub.s32 0, %v166
    %v168 = vrot.slane %v163, %v167
    %170 = vmatprep.subr.mxu0 0.0
    %171 = vmatpush1.msra.mxu0 %v162
    %172 = vmatprep.subr.mxu0 0.0
    %173 = vmatpush1.msra.mxu0 %v161
    %174 = vmatprep.subr.mxu0 0.0
    %175 = vmatpush1.msra.mxu0 %v160
    %176 = vmatprep.subr.mxu0 0.0
    %177 = vmatpush1.msra.mxu0 %v159
    %178 = vmatprep.subr.mxu0 0.0
    %179 = vmatpush1.msra.mxu0 %v158
    %180 = vmatprep.subr.mxu0 0.0
    %181 = vmatpush1.msra.mxu0 %v157
    %182 = vmatprep.subr.mxu0 0.0
    %183 = vmatpush1.msra.mxu0 %v156
    %184 = vmatprep.subr.mxu0 0.0
    %185 = vmatpush1.msra.mxu0 %v155
    %186 = vmatprep.subr.mxu0 0.0
    %187 = vmatpush1.msra.mxu0 %v154
    %188 = vmatprep.subr.mxu0 0.0
    %189 = vmatpush1.msra.mxu0 %v153
    %190 = vmatprep.subr.mxu0 0.0
    %191 = vmatpush1.msra.mxu0 %v152
    %192 = vmatprep.subr.mxu0 0.0
    %193 = vmatpush1.msra.mxu0 %v151
    %194 = vmatprep.subr.mxu0 0.0
    %195 = vmatpush1.msra.mxu0 %v150
    %196 = vmatprep.subr.mxu0 0.0
    %197 = vmatpush1.msra.mxu0 %v149
    %198 = vmatprep.subr.mxu0 0.0
    %199 = vmatpush1.msra.mxu0 %v148
    %200 = vmatprep.subr.mxu0 0.0
    %201 = vmatpush1.msra.mxu0 %v147
    %202 = vmatprep.subr.mxu0 0.0
    %203 = vmatpush2.msra.mxu0 0.0
    %204 = vmatprep.subr.mxu0 0.0
    %205 = vmatpush2.msra.mxu0 0.0
    %206 = vmatprep.subr.mxu0 0.0
    %207 = vmatpush2.msra.mxu0 0.0
    %208 = vmatprep.subr.mxu0 0.0
    %209 = vmatpush2.msra.mxu0 0.0
    %210 = vmatprep.subr.mxu0 0.0
    %211 = vmatpush2.msra.mxu0 0.0
    %212 = vmatprep.subr.mxu0 0.0
    %213 = vmatpush2.msra.mxu0 0.0
    %214 = vmatprep.subr.mxu0 0.0
    %215 = vmatpush2.msra.mxu0 0.0
    %216 = vmatprep.subr.mxu0 0.0
    %217 = vmatpush2.msra.mxu0 0.0
    %218 = vmatprep.subr.mxu0 0.0
    %219 = vmatpush2.msra.mxu0 0.0
    %220 = vmatprep.subr.mxu0 0.0
    %221 = vmatpush2.msra.mxu0 0.0
    %222 = vmatprep.subr.mxu0 0.0
    %223 = vmatpush2.msra.mxu0 0.0
    %224 = vmatprep.subr.mxu0 0.0
    %225 = vmatpush2.msra.mxu0 0.0
    %226 = vmatprep.subr.mxu0 0.0
    %227 = vmatpush2.msra.mxu0 0.0
    %228 = vmatprep.subr.mxu0 0.0
    %229 = vmatpush2.msra.mxu0 0.0
    %230 = vmatprep.subr.mxu0 0.0
    %231 = vmatpush2.msra.mxu0 0.0
    %232 = vmatprep.subr.mxu0 0.0
    %233 = vmatpush2.msra.mxu0 0.0
    %234 = vmatprep.mubr.f32.mxu0 0.0
    %235 = vmatmul.mubr.f32.gmra.mxu0 %v146
    %v236 = vpop.f32.mrf.mxu0
    %v237 = vadd.f32 %v168, %v236
    %v238 = vpop.f32.mrf.mxu0
    %239 = vdwg.mxu0
    %240 = vst [vmem:[#allocation8] sm:$0xff] %v237
    // Predicated region
    $region34: #{tpu_custom_call.1} parent=1 // pred_check
      _
    $region35: #{tpu_custom_call.1} parent=1 // pred_check_branch
      %242 = sbr.rel (0) target = $region37
    $region36: #{tpu_custom_call.1} parent=1 // pred_region
      %s244 = ssub.s32 128, 128
      %245 = vsyncadd [#allocation4], %s244
      %s247 = sshll.u32 [#allocation8], 4
      %s248 = int_to_ptr.vmem [resolvable:$true] %s247
      %250 = dma.vmem_to_hbm [thread:$0]  %s248, 128, %s5, [#allocation4]
    $region37: #{tpu_custom_call.1} parent=1 // pred_fallthru
      _
    // Predicated region
    $region38: #{tpu_custom_call.1} parent=1 // pred_check
      _
    $region39: #{tpu_custom_call.1} parent=1 // pred_check_branch
      %252 = sbr.rel (0) target = $region41
    $region40: #{tpu_custom_call.1} parent=1 // pred_region
      %253 = dma.done [#allocation4], 128
    $region41: #{tpu_custom_call.1} parent=1 // pred_fallthru
      _
    %254 = vsyncpa [#allocation3], 1
    %255 = vsyncpa [#allocation6], 1
    %256 = vsyncpa [#allocation4], 1

</llo_original>
